<compile_context>
chip_gen: v5e
topology: v5e:2x2
jax: 0.10.0
libtpu: 0.0.40
codegen_flags: <defaults>
</compile_context>

<pallas_src>
import functools

import jax
import jax.numpy as jnp
from jax.experimental import pallas as pl
from jax.experimental.pallas import tpu as pltpu


def _round_up(x, m):
    return ((x + m - 1) // m) * m


def _cdiv(a, b):
    return -(-a // b)


def _vmem_capacity_bytes():
    """Generation-aware VMEM capacity (64 MiB/TC on v7x, 128 MiB on v5e/v6e)."""
    try:
        return int(pltpu.get_tpu_info().vmem_capacity_bytes)
    except Exception:
        return 64 * 1024 * 1024   # conservative fallback (v7x per-TC)


def _bpr_gather_kernel(u_ref, i_ref, j_ref,            # scalar-prefetch (SMEM), shape (b,)
                       user_hbm, item_hbm,              # embedding tables, HBM (pl.ANY)
                       out_ref,                         # (tile_b, 1) per-row loss block
                       ue_buf, ie_buf, je_buf, sem,     # scratch
                       *, tile_b, batch):
    """One batch tile: DMA row gather from HBM, fused <ue, ie - je>, softplus."""
    base = pl.program_id(0) * tile_b
    # Valid rows in this tile (only the last tile is partial) -- no wasted DMAs
    # and no in-kernel padding mask; padded output rows are sliced off by the
    # wrapper before the final sum.
    rows = jnp.minimum(tile_b, batch - base)

    def issue(r, carry):
        row = base + r
        u_idx = u_ref[row]
        i_idx = i_ref[row]
        j_idx = j_ref[row]
        pltpu.make_async_copy(user_hbm.at[pl.ds(u_idx, 1), :],
                              ue_buf.at[pl.ds(r, 1), :], sem.at[0]).start()
        pltpu.make_async_copy(item_hbm.at[pl.ds(i_idx, 1), :],
                              ie_buf.at[pl.ds(r, 1), :], sem.at[0]).start()
        pltpu.make_async_copy(item_hbm.at[pl.ds(j_idx, 1), :],
                              je_buf.at[pl.ds(r, 1), :], sem.at[0]).start()
        return carry

    jax.lax.fori_loop(0, rows, issue, 0)

    def drain(r, carry):
        # Shape-matched dummy descriptors: only the transfer size matters for
        # the wait, and every issued copy moves exactly one (1, D) table row.
        pltpu.make_async_copy(user_hbm.at[pl.ds(0, 1), :],
                              ue_buf.at[pl.ds(0, 1), :], sem.at[0]).wait()
        pltpu.make_async_copy(item_hbm.at[pl.ds(0, 1), :],
                              ie_buf.at[pl.ds(0, 1), :], sem.at[0]).wait()
        pltpu.make_async_copy(item_hbm.at[pl.ds(0, 1), :],
                              je_buf.at[pl.ds(0, 1), :], sem.at[0]).wait()
        return carry

    jax.lax.fori_loop(0, rows, drain, 0)

    # Fused score: x_b = <ue_b, ie_b - je_b>   (all f32, VPU + lane reduce).
    ue = ue_buf[...]                                   # (tile_b, D)
    diff = ie_buf[...] - je_buf[...]                   # (tile_b, D)
    x = jnp.sum(ue * diff, axis=1, keepdims=True)      # (tile_b, 1)

    # Stable -log(sigmoid(x)) = softplus(-x) = max(-x, 0) + log(1 + exp(-|x|)).
    loss = jnp.maximum(-x, 0.0) + jnp.log(1.0 + jnp.exp(-jnp.abs(x)))

    # Direct per-row write (no in-kernel full reduce / broadcast); rows beyond
    # `rows` in the last tile hold stale values and are discarded by the
    # wrapper's [:b] slice.
    out_ref[...] = loss


def bpr_loss(user_matrix, item_matrix, u, i, j, *, tile_b=None):
    """BPR loss: sum_b -log(sigmoid(<u_b, i_b> - <u_b, j_b>))."""
    user_matrix = user_matrix.astype(jnp.float32)
    item_matrix = item_matrix.astype(jnp.float32)

    nu, d = user_matrix.shape
    ni, d2 = item_matrix.shape
    assert d == d2
    b = int(u.shape[0])

    vmem_cap = _vmem_capacity_bytes()

    if tile_b is None:
        # ~35% of (generation-specific) VMEM for the gather buffers; the rest
        # is headroom for the pipelined output block and Mosaic internals.
        budget = int(vmem_cap * 0.35)
        per_row_bytes = 3 * d * 4 + 2 * 4          # 3 gather rows + 2x out row
        cap = max(8, (budget // per_row_bytes) // 8 * 8)
        # >= 2 grid steps when the batch allows, so both v7x TCs get work.
        two_tiles = _round_up(_cdiv(b, 2), 8)
        tile_b = max(8, min(two_tiles, cap, 2048))
    tile_b = max(8, _round_up(int(tile_b), 8))

    bp = _round_up(b, tile_b)
    num_tiles = bp // tile_b

    # Exact VMEM footprint: 3 single-buffered (tile_b, D) gather buffers
    # + the double-buffered (tile_b, 1) output block + slack for internals.
    vmem_needed = 3 * tile_b * d * 4 + 2 * tile_b * 4 + (1 << 20)
    vmem_limit = None
    if vmem_needed > 12 * 1024 * 1024:
        vmem_limit = int(min(max(vmem_needed * 5 // 4, 16 << 20),
                             int(vmem_cap * 0.9)))

    u32 = u.astype(jnp.int32)
    i32 = i.astype(jnp.int32)
    j32 = j.astype(jnp.int32)

    kernel = functools.partial(_bpr_gather_kernel, tile_b=tile_b, batch=b)

    losses = pl.pallas_call(
        kernel,
        out_shape=jax.ShapeDtypeStruct((bp, 1), jnp.float32),
        grid_spec=pltpu.PrefetchScalarGridSpec(
            num_scalar_prefetch=3,                     # u, i, j -> SMEM
            grid=(num_tiles,),
            in_specs=[
                pl.BlockSpec(memory_space=pl.ANY),     # user table stays in HBM
                pl.BlockSpec(memory_space=pl.ANY),     # item table stays in HBM
            ],
            out_specs=pl.BlockSpec((tile_b, 1), lambda t, us, is_, js: (t, 0)),
            scratch_shapes=[
                pltpu.VMEM((tile_b, d), jnp.float32),  # gathered user rows
                pltpu.VMEM((tile_b, d), jnp.float32),  # gathered pos-item rows
                pltpu.VMEM((tile_b, d), jnp.float32),  # gathered neg-item rows
                pltpu.SemaphoreType.DMA((1,)),
            ],
        ),
        compiler_params=pltpu.CompilerParams(
            dimension_semantics=("parallel",),         # tiles are independent
            vmem_limit_bytes=vmem_limit,
        ),
    )(u32, i32, j32, user_matrix, item_matrix)

    # Contiguous slice + reduce in the wrapper (padded rows dropped here).
    return jnp.sum(losses[:b, 0])


def bpr_loss_ref(user_matrix, item_matrix, u, i, j):
    ue = user_matrix[u]
    ie = item_matrix[i]
    je = item_matrix[j]
    ui = jnp.sum(ue * ie, axis=1)
    uj = jnp.sum(ue * je, axis=1)
    return jnp.sum(-jnp.log(jax.nn.sigmoid(ui - uj)))


if __name__ == "__main__":
    # Module hyperparameters (small, consistent with BPR.__init__).
    user_size = 16
    item_size = 32
    embedding_size = 32
    batch_size = 8

    key = jax.random.PRNGKey(0)
    k_user, k_item, k_u, k_i, k_j = jax.random.split(key, 5)

    # nn.init.normal_(std=0.01) on both embedding tables.
    user_matrix = 0.01 * jax.random.normal(
        k_user, (user_size, embedding_size), dtype=jnp.float32)
    item_matrix = 0.01 * jax.random.normal(
        k_item, (item_size, embedding_size), dtype=jnp.float32)

    u = jax.random.randint(k_u, (batch_size,), 0, user_size, dtype=jnp.int32)
    i = jax.random.randint(k_i, (batch_size,), 0, item_size, dtype=jnp.int32)
    j = jax.random.randint(k_j, (batch_size,), 0, item_size, dtype=jnp.int32)

    loss = bpr_loss(user_matrix, item_matrix, u, i, j)
    loss = jax.block_until_ready(loss)

    ref = bpr_loss_ref(user_matrix, item_matrix, u, i, j)
    assert jnp.allclose(loss, ref, rtol=1e-5, atol=1e-5), (loss, ref)

    print("KERNEL_OK")
</pallas_src>

<mosaic_0001>
module attributes {stable_mosaic.version = 11 : i64} {
  func.func @_bpr_gather_kernel(%arg0: i32, %arg1: memref<8xi32, #tpu.memory_space<smem>>, %arg2: memref<8xi32, #tpu.memory_space<smem>>, %arg3: memref<8xi32, #tpu.memory_space<smem>>, %arg4: memref<16x32xf32, #tpu.memory_space<any>>, %arg5: memref<32x32xf32, #tpu.memory_space<any>>, %arg6: memref<8x1xf32, #tpu.memory_space<vmem>>, %arg7: memref<8x32xf32, #tpu.memory_space<vmem>>, %arg8: memref<8x32xf32, #tpu.memory_space<vmem>>, %arg9: memref<8x32xf32, #tpu.memory_space<vmem>>, %arg10: memref<1x!tpu.dma_semaphore, #tpu.memory_space<semaphore_mem>>) attributes {dimension_semantics = [#tpu.dimension_semantics<parallel>], iteration_bounds = array<i64: 1>, scalar_prefetch = 3 : i64, scratch_operands = 4 : i64, tpu.core_type = #tpu.core_type<tc>, window_params = [{}, {}, {transform_indices = @transform_2, window_bounds = array<i64: 8, 1>}]} {
    %c8_i32 = arith.constant 8 : i32
    %0 = arith.muli %arg0, %c8_i32 : i32
    %c8_i32_0 = arith.constant 8 : i32
    %1 = arith.subi %c8_i32_0, %0 : i32
    %c8_i32_1 = arith.constant 8 : i32
    %2 = arith.minsi %c8_i32_1, %1 : i32
    %c0_i32 = arith.constant 0 : i32
    %c0_i32_2 = arith.constant 0 : i32
    %3 = arith.subi %2, %c0_i32_2 : i32
    %4 = arith.addi %c0_i32_2, %3 : i32
    %c1_i32 = arith.constant 1 : i32
    scf.for %arg11 = %c0_i32_2 to %4 step %c1_i32  : i32 {
      %27 = arith.addi %0, %arg11 : i32
      %28 = arith.index_cast %27 : i32 to index
      %29 = memref.load %arg1[%28] : memref<8xi32, #tpu.memory_space<smem>>
      %30 = arith.index_cast %27 : i32 to index
      %31 = memref.load %arg2[%30] : memref<8xi32, #tpu.memory_space<smem>>
      %32 = arith.index_cast %27 : i32 to index
      %33 = memref.load %arg3[%32] : memref<8xi32, #tpu.memory_space<smem>>
      %c0_i32_17 = arith.constant 0 : i32
      %c0_i32_18 = arith.constant 0 : i32
      %34 = tpu.memref_slice %arg4[%29, %c0_i32_18] : memref<16x32xf32, #tpu.memory_space<any>> -> memref<1x32xf32, #tpu.memory_space<any>>
      %c0_i32_19 = arith.constant 0 : i32
      %35 = tpu.memref_slice %arg7[%arg11, %c0_i32_19] : memref<8x32xf32, #tpu.memory_space<vmem>> -> memref<1x32xf32, #tpu.memory_space<vmem>>
      %36 = tpu.memref_slice %arg10[%c0_i32_17] : memref<1x!tpu.dma_semaphore, #tpu.memory_space<semaphore_mem>> -> memref<1x!tpu.dma_semaphore, #tpu.memory_space<semaphore_mem>>
      %37 = tpu.memref_squeeze %36 : memref<1x!tpu.dma_semaphore, #tpu.memory_space<semaphore_mem>> -> memref<!tpu.dma_semaphore, #tpu.memory_space<semaphore_mem>>
      tpu.enqueue_dma source(%34 : memref<1x32xf32, #tpu.memory_space<any>>) target(%35 : memref<1x32xf32, #tpu.memory_space<vmem>>) target_semaphore(%37 : memref<!tpu.dma_semaphore, #tpu.memory_space<semaphore_mem>>)
      %c0_i32_20 = arith.constant 0 : i32
      %c0_i32_21 = arith.constant 0 : i32
      %38 = tpu.memref_slice %arg5[%31, %c0_i32_21] : memref<32x32xf32, #tpu.memory_space<any>> -> memref<1x32xf32, #tpu.memory_space<any>>
      %c0_i32_22 = arith.constant 0 : i32
      %39 = tpu.memref_slice %arg8[%arg11, %c0_i32_22] : memref<8x32xf32, #tpu.memory_space<vmem>> -> memref<1x32xf32, #tpu.memory_space<vmem>>
      %40 = tpu.memref_slice %arg10[%c0_i32_20] : memref<1x!tpu.dma_semaphore, #tpu.memory_space<semaphore_mem>> -> memref<1x!tpu.dma_semaphore, #tpu.memory_space<semaphore_mem>>
      %41 = tpu.memref_squeeze %40 : memref<1x!tpu.dma_semaphore, #tpu.memory_space<semaphore_mem>> -> memref<!tpu.dma_semaphore, #tpu.memory_space<semaphore_mem>>
      tpu.enqueue_dma source(%38 : memref<1x32xf32, #tpu.memory_space<any>>) target(%39 : memref<1x32xf32, #tpu.memory_space<vmem>>) target_semaphore(%41 : memref<!tpu.dma_semaphore, #tpu.memory_space<semaphore_mem>>)
      %c0_i32_23 = arith.constant 0 : i32
      %c0_i32_24 = arith.constant 0 : i32
      %42 = tpu.memref_slice %arg5[%33, %c0_i32_24] : memref<32x32xf32, #tpu.memory_space<any>> -> memref<1x32xf32, #tpu.memory_space<any>>
      %c0_i32_25 = arith.constant 0 : i32
      %43 = tpu.memref_slice %arg9[%arg11, %c0_i32_25] : memref<8x32xf32, #tpu.memory_space<vmem>> -> memref<1x32xf32, #tpu.memory_space<vmem>>
      %44 = tpu.memref_slice %arg10[%c0_i32_23] : memref<1x!tpu.dma_semaphore, #tpu.memory_space<semaphore_mem>> -> memref<1x!tpu.dma_semaphore, #tpu.memory_space<semaphore_mem>>
      %45 = tpu.memref_squeeze %44 : memref<1x!tpu.dma_semaphore, #tpu.memory_space<semaphore_mem>> -> memref<!tpu.dma_semaphore, #tpu.memory_space<semaphore_mem>>
      tpu.enqueue_dma source(%42 : memref<1x32xf32, #tpu.memory_space<any>>) target(%43 : memref<1x32xf32, #tpu.memory_space<vmem>>) target_semaphore(%45 : memref<!tpu.dma_semaphore, #tpu.memory_space<semaphore_mem>>)
    }
    %c0_i32_3 = arith.constant 0 : i32
    %c0_i32_4 = arith.constant 0 : i32
    %5 = arith.subi %2, %c0_i32_4 : i32
    %6 = arith.addi %c0_i32_4, %5 : i32
    %c1_i32_5 = arith.constant 1 : i32
    scf.for %arg11 = %c0_i32_4 to %6 step %c1_i32_5  : i32 {
      %c0_i32_17 = arith.constant 0 : i32
      %c0_i32_18 = arith.constant 0 : i32
      %c0_i32_19 = arith.constant 0 : i32
      %27 = tpu.memref_slice %arg4[%c0_i32_18, %c0_i32_19] : memref<16x32xf32, #tpu.memory_space<any>> -> memref<1x32xf32, #tpu.memory_space<any>>
      %c0_i32_20 = arith.constant 0 : i32
      %c0_i32_21 = arith.constant 0 : i32
      %28 = tpu.memref_slice %arg7[%c0_i32_20, %c0_i32_21] : memref<8x32xf32, #tpu.memory_space<vmem>> -> memref<1x32xf32, #tpu.memory_space<vmem>>
      %29 = tpu.memref_slice %arg10[%c0_i32_17] : memref<1x!tpu.dma_semaphore, #tpu.memory_space<semaphore_mem>> -> memref<1x!tpu.dma_semaphore, #tpu.memory_space<semaphore_mem>>
      %30 = tpu.memref_squeeze %29 : memref<1x!tpu.dma_semaphore, #tpu.memory_space<semaphore_mem>> -> memref<!tpu.dma_semaphore, #tpu.memory_space<semaphore_mem>>
      tpu.wait_dma2 semaphore(%30 : memref<!tpu.dma_semaphore, #tpu.memory_space<semaphore_mem>>) src(%27 : memref<1x32xf32, #tpu.memory_space<any>>) dst(%28 : memref<1x32xf32, #tpu.memory_space<vmem>>)
      %c0_i32_22 = arith.constant 0 : i32
      %c0_i32_23 = arith.constant 0 : i32
      %c0_i32_24 = arith.constant 0 : i32
      %31 = tpu.memref_slice %arg5[%c0_i32_23, %c0_i32_24] : memref<32x32xf32, #tpu.memory_space<any>> -> memref<1x32xf32, #tpu.memory_space<any>>
      %c0_i32_25 = arith.constant 0 : i32
      %c0_i32_26 = arith.constant 0 : i32
      %32 = tpu.memref_slice %arg8[%c0_i32_25, %c0_i32_26] : memref<8x32xf32, #tpu.memory_space<vmem>> -> memref<1x32xf32, #tpu.memory_space<vmem>>
      %33 = tpu.memref_slice %arg10[%c0_i32_22] : memref<1x!tpu.dma_semaphore, #tpu.memory_space<semaphore_mem>> -> memref<1x!tpu.dma_semaphore, #tpu.memory_space<semaphore_mem>>
      %34 = tpu.memref_squeeze %33 : memref<1x!tpu.dma_semaphore, #tpu.memory_space<semaphore_mem>> -> memref<!tpu.dma_semaphore, #tpu.memory_space<semaphore_mem>>
      tpu.wait_dma2 semaphore(%34 : memref<!tpu.dma_semaphore, #tpu.memory_space<semaphore_mem>>) src(%31 : memref<1x32xf32, #tpu.memory_space<any>>) dst(%32 : memref<1x32xf32, #tpu.memory_space<vmem>>)
      %c0_i32_27 = arith.constant 0 : i32
      %c0_i32_28 = arith.constant 0 : i32
      %c0_i32_29 = arith.constant 0 : i32
      %35 = tpu.memref_slice %arg5[%c0_i32_28, %c0_i32_29] : memref<32x32xf32, #tpu.memory_space<any>> -> memref<1x32xf32, #tpu.memory_space<any>>
      %c0_i32_30 = arith.constant 0 : i32
      %c0_i32_31 = arith.constant 0 : i32
      %36 = tpu.memref_slice %arg9[%c0_i32_30, %c0_i32_31] : memref<8x32xf32, #tpu.memory_space<vmem>> -> memref<1x32xf32, #tpu.memory_space<vmem>>
      %37 = tpu.memref_slice %arg10[%c0_i32_27] : memref<1x!tpu.dma_semaphore, #tpu.memory_space<semaphore_mem>> -> memref<1x!tpu.dma_semaphore, #tpu.memory_space<semaphore_mem>>
      %38 = tpu.memref_squeeze %37 : memref<1x!tpu.dma_semaphore, #tpu.memory_space<semaphore_mem>> -> memref<!tpu.dma_semaphore, #tpu.memory_space<semaphore_mem>>
      tpu.wait_dma2 semaphore(%38 : memref<!tpu.dma_semaphore, #tpu.memory_space<semaphore_mem>>) src(%35 : memref<1x32xf32, #tpu.memory_space<any>>) dst(%36 : memref<1x32xf32, #tpu.memory_space<vmem>>)
    }
    %c0 = arith.constant 0 : index
    %c0_6 = arith.constant 0 : index
    %7 = vector.load %arg7[%c0, %c0_6] : memref<8x32xf32, #tpu.memory_space<vmem>>, vector<8x32xf32>
    %c0_7 = arith.constant 0 : index
    %c0_8 = arith.constant 0 : index
    %8 = vector.load %arg8[%c0_7, %c0_8] : memref<8x32xf32, #tpu.memory_space<vmem>>, vector<8x32xf32>
    %c0_9 = arith.constant 0 : index
    %c0_10 = arith.constant 0 : index
    %9 = vector.load %arg9[%c0_9, %c0_10] : memref<8x32xf32, #tpu.memory_space<vmem>>, vector<8x32xf32>
    %10 = arith.subf %8, %9 : vector<8x32xf32>
    %11 = arith.mulf %7, %10 : vector<8x32xf32>
    %cst = arith.constant dense<0.000000e+00> : vector<8xf32>
    %12 = vector.multi_reduction <add>, %11, %cst [1] : vector<8x32xf32> to vector<8xf32>
    %13 = vector.shape_cast %12 : vector<8xf32> to vector<8x1xf32>
    %cst_11 = arith.constant 0.000000e+00 : f32
    %14 = vector.broadcast %cst_11 : f32 to vector<8x1xf32>
    %15 = arith.subf %14, %13 : vector<8x1xf32>
    %cst_12 = arith.constant 0.000000e+00 : f32
    %16 = vector.broadcast %cst_12 : f32 to vector<8x1xf32>
    %17 = arith.maximumf %15, %16 : vector<8x1xf32>
    %18 = math.absf %13 : vector<8x1xf32>
    %cst_13 = arith.constant 0.000000e+00 : f32
    %19 = vector.broadcast %cst_13 : f32 to vector<8x1xf32>
    %20 = arith.subf %19, %18 : vector<8x1xf32>
    %21 = math.exp %20 : vector<8x1xf32>
    %cst_14 = arith.constant 1.000000e+00 : f32
    %22 = vector.broadcast %cst_14 : f32 to vector<8x1xf32>
    %23 = arith.addf %22, %21 : vector<8x1xf32>
    %24 = math.log %23 : vector<8x1xf32>
    %25 = arith.addf %17, %24 : vector<8x1xf32>
    %c0_15 = arith.constant 0 : index
    %c0_16 = arith.constant 0 : index
    %26 = vector.load %arg6[%c0_15, %c0_16] : memref<8x1xf32, #tpu.memory_space<vmem>>, vector<8x1xf32>
    tpu.vector_store %arg6[%c0_15, %c0_16], %25 {strides = array<i32>} : memref<8x1xf32, #tpu.memory_space<vmem>>, vector<8x1xf32>,
    return
  }
  func.func @transform_2(%arg0: i32, %arg1: memref<8xi32, #tpu.memory_space<smem>>, %arg2: memref<8xi32, #tpu.memory_space<smem>>, %arg3: memref<8xi32, #tpu.memory_space<smem>>) -> (i32, i32) {
    %c0_i32 = arith.constant 0 : i32
    %c0_i32_0 = arith.constant 0 : i32
    return %arg0, %c0_i32 : i32, i32
  }
}

</mosaic_0001>

<llo_original>
// kernel: tpu_custom_call.1
$region0: #{tpu_custom_call.1}
  #allocation0 [shape = 'u32[]', space=smem, size = 0x4, offset = 0x4, fixed_abs, tag = 'smem constant byte address 0x4 - core index']
  #allocation1 [shape = 'u32[72,128]{1,0:T(1,128)}', space=vmem, size = 0x9000, scoped, tag = 'internal scratch']
  #allocation2 [shape = 'f32[8,32]{1,0:T(8,128)}', space=vmem, size = 0x1000, scoped, tag = 'scratch operand']
  #allocation3 [shape = 'f32[8,32]{1,0:T(8,128)}', space=vmem, size = 0x1000, scoped, tag = 'scratch operand']
  #allocation4 [shape = 'f32[8,32]{1,0:T(8,128)}', space=vmem, size = 0x1000, scoped, tag = 'scratch operand']
  #allocation5 [shape = 's32[1]{0}', space=sflag, size = 0x4, scoped, tag = 'scratch operand']
  #allocation6 [shape = 's32[1]{0}', space=sflag, size = 0x4, scoped, tag = 'scoped memory for tpu_custom_call.1']
  #allocation7 [shape = 'u8[512]{0}', space=smem, size = 0x200, scoped, tag = 'prefetched SMEM operand 0']
  #allocation8 [shape = 'u8[512]{0}', space=smem, size = 0x200, scoped, tag = 'prefetched SMEM operand 1']
  #allocation9 [shape = 'u8[512]{0}', space=smem, size = 0x200, scoped, tag = 'prefetched SMEM operand 2']
  #allocation10 [shape = 's32[]', space=sflag, size = 0x4, offset = 0, fixed_abs, tag = 'sflag constant byte address 0x0 - dummy sync flag']
  #allocation11 [shape = 's32[]', space=sflag, size = 0x4, offset = 0, fixed_abs, tag = 'sflag constant byte address 0x0 - dummy sync flag']
  #allocation12 [shape = 'u32[]', space=smem, size = 0x4, offset = 0x44, fixed_abs, tag = 'smem constant byte address 0x44 - assertion arg 0']
  #allocation13 [shape = 'u32[]', space=smem, size = 0x4, offset = 0x48, fixed_abs, tag = 'smem constant byte address 0x48 - assertion arg 1']
  #allocation14 [shape = 's32[]', space=sflag, size = 0x4, offset = 0, fixed_abs, tag = 'sflag constant byte address 0x0 - dummy sync flag']
  #allocation15 [shape = 's32[]', space=sflag, size = 0x4, offset = 0, fixed_abs, tag = 'sflag constant byte address 0x0 - dummy sync flag']
  #allocation16 [shape = 's32[]', space=sflag, size = 0x4, offset = 0, fixed_abs, tag = 'sflag constant byte address 0x0 - dummy sync flag']
  #allocation17 [shape = 's32[]', space=sflag, size = 0x4, offset = 0, fixed_abs, tag = 'sflag constant byte address 0x0 - dummy sync flag']
  %s0 = inlined_call_operand.hbm [shape: s32[8], index: 0, kind: input, shape index: {}]
  %s1 = inlined_call_operand.hbm [shape: s32[8], index: 1, kind: input, shape index: {}]
  %s2 = inlined_call_operand.vmem [shape: s32[8], index: 2, kind: input, shape index: {}]
  %s3 = inlined_call_operand.hbm [shape: f32[16,32], index: 3, kind: input, shape index: {}]
  %s4 = inlined_call_operand.hbm [shape: f32[32,32], index: 4, kind: input, shape index: {}]
  %s5 = inlined_call_operand.vmem [shape: f32[8,1], index: 5, kind: output, shape index: {}]
  %s6 = sld [smem:[#allocation0]]
  $region36: #{tpu_custom_call.1} parent=0
    _
  %s8 = ssub.s32 1, %s6
  %s9 = scalar_select 0, %s8, %s6
  %s11 = sshll.u32 %s0, 4
  %s12 = int_to_ptr.hbm [resolvable:$true] %s11
  %14 = dma.hbm_to_smem %s12, 16, [#allocation7], [#allocation6]
  %s16 = sshll.u32 %s1, 4
  %s17 = int_to_ptr.hbm [resolvable:$true] %s16
  %19 = dma.hbm_to_smem %s17, 16, [#allocation8], [#allocation6]
  %s21 = sshll.u32 %s2, 4
  %s22 = int_to_ptr.vmem [resolvable:$true] %s21
  %24 = dma.vmem_to_smem %s22, 16, [#allocation9], [#allocation6]
  %26 = dma.done [#allocation6], 48
  %27 = sfence
  %s28 = smul.u32 0, 8
  %s29 = ssub.s32 8, %s28
  %p30 = scmp.lt.s32.totalorder %s29, 8
  %s31 = scalar_select %p30, %s29, 8
  // While loop
  $region2: #{tpu_custom_call.1} parent=0 // loop_pre_header
    _
  $region3: #{tpu_custom_call.1} parent=0 // loop_header
    %s33 = sphi 0, %s35
    %p34 = scmp.ge.s32.totalorder %s33, %s31
  $region4: #{tpu_custom_call.1} parent=0 // loop_header_branch
    %37 = sbr.rel (%p34) target = $region8
  $region5: #{tpu_custom_call.1} parent=0 // loop_body
    %s38 = sadd.s32 %s28, %s33
    %s39 = sld [smem:[#allocation7 + %s38]]
    %s40 = sld [smem:[#allocation8 + %s38]]
    %s41 = sld [smem:[#allocation9 + %s38]]
    %s42 = scalar_lea.hbm %s3, %s39
    %s43 = scalar_lea.vmem [#allocation2], %s33
    // Predicated region
    $region9: #{tpu_custom_call.1} parent=5 // pred_check
      _
    $region10: #{tpu_custom_call.1} parent=5 // pred_check_branch
      %45 = sbr.rel target = $region12
    $region11: #{tpu_custom_call.1} parent=5 // pred_region
      %46 = sst [smem:[#allocation12]] [#allocation11]
      %47 = sst [smem:[#allocation13]] [#allocation10]
    $region12: #{tpu_custom_call.1} parent=5 // pred_fallthru
      _
    %49 = shalt.err (0)
    %s51 = sshll.u32 %s42, 4
    %s52 = int_to_ptr.hbm [resolvable:$true] %s51
    %s53 = sshll.u32 %s43, 4
    %s54 = int_to_ptr.vmem [resolvable:$true] %s53
    %56 = dma.hbm_to_vmem [thread:$0]  %s52, 16, %s54, [#allocation5]
    %s57 = scalar_lea.hbm %s4, %s40
    %s58 = scalar_lea.vmem [#allocation3], %s33
    // Predicated region
    $region13: #{tpu_custom_call.1} parent=5 // pred_check
      _
    $region14: #{tpu_custom_call.1} parent=5 // pred_check_branch
      %60 = sbr.rel target = $region16
    $region15: #{tpu_custom_call.1} parent=5 // pred_region
      %61 = sst [smem:[#allocation12]] [#allocation15]
      %62 = sst [smem:[#allocation13]] [#allocation14]
    $region16: #{tpu_custom_call.1} parent=5 // pred_fallthru
      _
    %64 = shalt.err (0)
    %s66 = sshll.u32 %s57, 4
    %s67 = int_to_ptr.hbm [resolvable:$true] %s66
    %s68 = sshll.u32 %s58, 4
    %s69 = int_to_ptr.vmem [resolvable:$true] %s68
    %71 = dma.hbm_to_vmem [thread:$0]  %s67, 16, %s69, [#allocation5]
    %s72 = scalar_lea.hbm %s4, %s41
    %s73 = scalar_lea.vmem [#allocation4], %s33
    // Predicated region
    $region17: #{tpu_custom_call.1} parent=5 // pred_check
      _
    $region18: #{tpu_custom_call.1} parent=5 // pred_check_branch
      %75 = sbr.rel target = $region20
    $region19: #{tpu_custom_call.1} parent=5 // pred_region
      %76 = sst [smem:[#allocation12]] [#allocation17]
      %77 = sst [smem:[#allocation13]] [#allocation16]
    $region20: #{tpu_custom_call.1} parent=5 // pred_fallthru
      _
    %79 = shalt.err (0)
    %s81 = sshll.u32 %s72, 4
    %s82 = int_to_ptr.hbm [resolvable:$true] %s81
    %s83 = sshll.u32 %s73, 4
    %s84 = int_to_ptr.vmem [resolvable:$true] %s83
    %86 = dma.hbm_to_vmem [thread:$0]  %s82, 16, %s84, [#allocation5]
  $region6: #{tpu_custom_call.1} parent=0 // loop_footer
    %s35 = sadd.s32 %s33, 1
  $region7: #{tpu_custom_call.1} parent=0 // loop_footer_branch
    %32 = sbr.rel target = $region3
  $region8: #{tpu_custom_call.1} parent=0 // loop_exit
    _
  // While loop
  $region21: #{tpu_custom_call.1} parent=0 // loop_pre_header
    _
  $region22: #{tpu_custom_call.1} parent=0 // loop_header
    %s88 = sphi 0, %s90
    %p89 = scmp.ge.s32.totalorder %s88, %s31
  $region23: #{tpu_custom_call.1} parent=0 // loop_header_branch
    %92 = sbr.rel (%p89) target = $region27
  $region24: #{tpu_custom_call.1} parent=0 // loop_body
    %s93 = smul.u32 1, 1
    %s94 = sshll.u32 %s93, 4
    %95 = dma.done [#allocation5], %s94
    %s96 = sshll.u32 %s93, 4
    %97 = dma.done [#allocation5], %s96
    %s98 = sshll.u32 %s93, 4
    %99 = dma.done [#allocation5], %s98
  $region25: #{tpu_custom_call.1} parent=0 // loop_footer
    %s90 = sadd.s32 %s88, 1
  $region26: #{tpu_custom_call.1} parent=0 // loop_footer_branch
    %87 = sbr.rel target = $region22
  $region27: #{tpu_custom_call.1} parent=0 // loop_exit
    _
  %v100 = vld [vmem:[#allocation2] sm:$0xff]
  %v101 = vld [vmem:[#allocation3] sm:$0xff]
  %v102 = vld [vmem:[#allocation4] sm:$0xff]
  %v103 = vsub.f32 %v101, %v102
  %v104 = vmul.f32 %v100, %v103
  %vm105 = vcmask 261120
  %v106 = vsel %vm105, %v104, 0.0
  %107 = vadd.xlane.f32.xlu0 %v106
  %v108 = vpop.xlane.xlu0 %107
  %v109 = vsub.f32 0.0, %v108
  %v110 = vmax.f32 %v109, 0.0
  %v111 = vand.u32 2147483647, %v108
  %v112 = vsub.f32 0.0, %v111
  %v113 = vmul.f32 %v112, 1.442695
  %v114 = vpow.pop %v113
  %v115 = vadd.f32 %v114, 1.0
  %v116 = vlog2.pop %v115
  %v117 = vmul.f32 %v116, 0.6931472
  %v118 = vadd.f32 %v110, %v117
  %vm119 = vcmask 7168
  %120 = vst.msk [vmem:[%s5] sm:$0xff] %vm119, %v118
  // Predicated region
  $region28: #{tpu_custom_call.1} parent=0 // pred_check
    _
  $region29: #{tpu_custom_call.1} parent=0 // pred_check_branch
    %122 = sbr.rel (0) target = $region31
  $region30: #{tpu_custom_call.1} parent=0 // pred_region
    _
  $region31: #{tpu_custom_call.1} parent=0 // pred_fallthru
    _
  // Predicated region
  $region32: #{tpu_custom_call.1} parent=0 // pred_check
    _
  $region33: #{tpu_custom_call.1} parent=0 // pred_check_branch
    %124 = sbr.rel (0) target = $region35
  $region34: #{tpu_custom_call.1} parent=0 // pred_region
    _
  $region35: #{tpu_custom_call.1} parent=0 // pred_fallthru
    _
  %125 = vsyncmov [#allocation5]
  %s126 = vpop.sfrf %125
  %p127 = scmp.eq.s32.totalorder %s126, 0
  %p128 = pneg %p127
  %130 = shalt.err (%p128)

</llo_original>
